<compile_context>
chip_gen: v6e
topology: v6e:2x2x1
jax: 0.10.0
libtpu: 0.0.40
codegen_flags: <defaults>
</compile_context>

<pallas_src>
import jax
import jax.numpy as jnp
from jax.experimental import pallas as pl
from jax.experimental.pallas import tpu as pltpu

_MIB = 1 << 20


def _round_up(x: int, m: int) -> int:
    return ((x + m - 1) // m) * m


def _mlp_kernel(x_ref, w1_ref, b1_ref, w2_ref, b2_ref, o_ref, acc_ref):
    k = pl.program_id(1)

    @pl.when(k == 0)
    def _init():
        acc_ref[...] = jnp.zeros_like(acc_ref)

    # Layer 1 for this hidden slab: (tm, in_p) @ (in_p, TH) -> f32, + b1 slab.
    h = jnp.dot(x_ref[...], w1_ref[...], preferred_element_type=jnp.float32)
    h = h + b1_ref[...]                       # (1, TH) broadcasts over rows

    # Layer 2 partial product for this slab, accumulated in f32 VMEM scratch.
    acc_ref[...] += jnp.dot(h.astype(w2_ref.dtype), w2_ref[...],
                            preferred_element_type=jnp.float32)

    @pl.when(k == pl.num_programs(1) - 1)
    def _finalize():
        o_ref[...] = (acc_ref[...] + b2_ref[...]).astype(o_ref.dtype)


def prepare_linear_params(w1, b1, w2, b2, *, block_hidden=None):
    """Pad + bf16-cast parameters once (hoisted out of the per-call hot path)."""
    b1 = jnp.reshape(b1, (1, -1))
    b2 = jnp.reshape(b2, (1, -1))
    in_dim, hid_dim = w1.shape
    out_dim = w2.shape[1]

    in_p = _round_up(in_dim, 128)
    out_p = _round_up(out_dim, 128)
    hid_128 = _round_up(hid_dim, 128)

    # Hidden (reduction) slab: full hidden when small, else 512-wide slabs
    # (multiple of 256 keeps the 256x256 MXUs of v6e/v7x fully fed).
    if block_hidden is None:
        th = hid_128 if hid_128 <= 1024 else 512
    else:
        th = min(max(128, _round_up(block_hidden, 128)), hid_128)
    hid_p = _round_up(hid_128, th)

    # Zero padding is exact w.r.t. the math (padded rows/cols contribute 0).
    w1_p = jnp.pad(w1, ((0, in_p - in_dim), (0, hid_p - hid_dim))).astype(jnp.bfloat16)
    w2_p = jnp.pad(w2, ((0, hid_p - hid_dim), (0, out_p - out_dim))).astype(jnp.bfloat16)
    b1_p = jnp.pad(b1, ((0, 0), (0, hid_p - hid_dim))).astype(jnp.float32)
    b2_p = jnp.pad(b2, ((0, 0), (0, out_p - out_dim))).astype(jnp.float32)

    return dict(w1=w1_p, b1=b1_p, w2=w2_p, b2=b2_p,
                in_dim=in_dim, hid_dim=hid_dim, out_dim=out_dim,
                in_p=in_p, hid_p=hid_p, out_p=out_p, th=th)


def _physical_vmem_bytes() -> int:
    try:
        return int(pltpu.get_tpu_info().vmem_capacity_bytes)
    except Exception:                      # pragma: no cover
        return 64 * _MIB                   # conservative: v7x per-TC VMEM


def _footprint_bytes(tm, in_p, th, out_p, nk, out_itemsize) -> int:
    w_bufs = 1 if nk == 1 else 2           # weight slabs only pipeline when k moves
    return (2 * tm * in_p * 2              # x tile (bf16, double buffered)
            + w_bufs * in_p * th * 2       # W1 slab(s) bf16
            + w_bufs * 8 * th * 4          # b1 slab(s) f32, sublane-padded to 8
            + w_bufs * th * out_p * 2      # W2 slab(s) bf16
            + 8 * out_p * 4                # b2 f32 (single buffered)
            + 2 * tm * out_p * out_itemsize  # out tile (double buffered)
            + tm * out_p * 4)              # f32 accumulator scratch


def custom_linear_fwd(x, params, *, block_m=None):
    """Fused two-layer linear forward using pre-prepared (padded/bf16) params."""
    batch, in_dim = x.shape
    assert in_dim == params["in_dim"], "x feature dim mismatch with prepared params"
    in_p, hid_p, out_p, th = params["in_p"], params["hid_p"], params["out_p"], params["th"]
    out_dim = params["out_dim"]
    out_dtype = x.dtype
    out_itemsize = jnp.dtype(out_dtype).itemsize

    phys_vmem = _physical_vmem_bytes()
    vmem_cap = min(100 * _MIB, int(phys_vmem * 0.75))

    # Batch tile: multiple of 16 (bf16 sublane packing); bigger on 128 MiB parts.
    if block_m is None:
        block_m = 512 if phys_vmem >= 100 * _MIB else 256
    tm = min(block_m, _round_up(batch, 16))
    tm = max(16, (tm // 16) * 16)
    nk = hid_p // th

    # Shrink the batch tile until the working set fits the VMEM budget.
    while (_footprint_bytes(tm, in_p, th, out_p, nk, out_itemsize)
           > vmem_cap - 4 * _MIB and tm > 16):
        tm = max(16, tm // 2)
    batch_p = _round_up(batch, tm)

    # Only touch x if padding is actually needed (skip the extra HBM pass).
    x_k = x.astype(jnp.bfloat16)
    if batch_p != batch or in_p != in_dim:
        x_k = jnp.pad(x_k, ((0, batch_p - batch), (0, in_p - in_dim)))

    need = _footprint_bytes(tm, in_p, th, out_p, nk, out_itemsize)
    vmem_limit = min(max(32 * _MIB, int(need * 1.25) + 4 * _MIB), vmem_cap)

    flops = 2 * batch_p * in_p * hid_p + 2 * batch_p * hid_p * out_p
    bytes_accessed = int(
        x_k.size * 2
        + params["w1"].size * 2 + params["w2"].size * 2
        + params["b1"].size * 4 + params["b2"].size * 4
        + batch_p * out_p * out_itemsize)

    def _run(single_buffer_consts: bool):
        def spec(shape, index_map, constant=False):
            if constant and single_buffer_consts and hasattr(pl, "Buffered"):
                return pl.BlockSpec(shape, index_map, pipeline_mode=pl.Buffered(1))
            return pl.BlockSpec(shape, index_map)

        kconst = nk == 1  # single K step => weight slabs never change index
        return pl.pallas_call(
            _mlp_kernel,
            out_shape=jax.ShapeDtypeStruct((batch_p, out_p), out_dtype),
            grid=(batch_p // tm, nk),
            in_specs=[
                spec((tm, in_p), lambda i, k: (i, 0)),           # x: batch-tiled
                spec((in_p, th), lambda i, k: (0, k), kconst),   # W1 slab
                spec((1, th), lambda i, k: (0, k), kconst),      # b1 slab
                spec((th, out_p), lambda i, k: (k, 0), kconst),  # W2 slab
                spec((1, out_p), lambda i, k: (0, 0), True),     # b2: constant
            ],
            out_specs=pl.BlockSpec((tm, out_p), lambda i, k: (i, 0)),
            scratch_shapes=[pltpu.VMEM((tm, out_p), jnp.float32)],
            compiler_params=pltpu.CompilerParams(
                dimension_semantics=("parallel", "arbitrary"),
                vmem_limit_bytes=vmem_limit,
            ),
            cost_estimate=pl.CostEstimate(
                flops=flops, transcendentals=0, bytes_accessed=bytes_accessed),
        )(x_k, params["w1"], params["b1"], params["w2"], params["b2"])

    try:
        out_padded = _run(True)
    except Exception:  # pragma: no cover - jax without pipeline_mode=Buffered(1)
        out_padded = _run(False)

    if batch_p != batch or out_p != out_dim:
        return out_padded[:batch, :out_dim]
    return out_padded


def custom_linear(x, w1, b1, w2, b2, *, block_m=None):
    """Convenience one-shot API (prefer hoisting prepare_linear_params)."""
    return custom_linear_fwd(x, prepare_linear_params(w1, b1, w2, b2),
                             block_m=block_m)


if __name__ == "__main__":
    # Small shapes consistent with the module's __init__ dims.
    batch, input_dim, hidden_dim, output_dim = 8, 32, 64, 16

    key = jax.random.PRNGKey(0)
    kx, kw1, kb1, kw2, kb2 = jax.random.split(key, 5)

    x = jax.random.normal(kx, (batch, input_dim), dtype=jnp.float32)
    w1 = jax.random.normal(kw1, (input_dim, hidden_dim), dtype=jnp.float32) * 0.1
    b1 = jax.random.normal(kb1, (hidden_dim,), dtype=jnp.float32) * 0.1
    w2 = jax.random.normal(kw2, (hidden_dim, output_dim), dtype=jnp.float32) * 0.1
    b2 = jax.random.normal(kb2, (output_dim,), dtype=jnp.float32) * 0.1

    # Parameter prep (pad + bf16 cast) is hoisted: done once, reused per call.
    params = prepare_linear_params(w1, b1, w2, b2)

    out = custom_linear_fwd(x, params)
    jax.block_until_ready(out)

    # Pure-JAX f32 reference. bf16 matmul operands (f32 accumulation) need a
    # looser tolerance than the all-f32 version.
    ref = (x @ w1 + b1[None, :]) @ w2 + b2[None, :]
    assert out.shape == (batch, output_dim)
    assert jnp.allclose(out, ref, atol=5e-2, rtol=5e-2), float(
        jnp.max(jnp.abs(out - ref)))

    print("KERNEL_OK")
</pallas_src>

<mosaic_0001>
module attributes {stable_mosaic.version = 11 : i64} {
  func.func @_mlp_kernel(%arg0: i32, %arg1: i32, %arg2: memref<16x128xbf16, #tpu.memory_space<vmem>>, %arg3: memref<128x128xbf16, #tpu.memory_space<vmem>>, %arg4: memref<1x128xf32, #tpu.memory_space<vmem>>, %arg5: memref<128x128xbf16, #tpu.memory_space<vmem>>, %arg6: memref<1x128xf32, #tpu.memory_space<vmem>>, %arg7: memref<16x128xf32, #tpu.memory_space<vmem>>, %arg8: memref<16x128xf32, #tpu.memory_space<vmem>>) attributes {dimension_semantics = [#tpu.dimension_semantics<parallel>, #tpu.dimension_semantics<arbitrary>], iteration_bounds = array<i64: 1, 1>, scalar_prefetch = 0 : i64, scratch_operands = 1 : i64, tpu.core_type = #tpu.core_type<tc>, window_params = [{transform_indices = @transform_0, window_bounds = array<i64: 16, 128>}, {pipeline_mode = #tpu.pipeline_mode<synchronous>, transform_indices = @transform_1, window_bounds = array<i64: 128, 128>}, {pipeline_mode = #tpu.pipeline_mode<synchronous>, transform_indices = @transform_2, window_bounds = array<i64: 1, 128>}, {pipeline_mode = #tpu.pipeline_mode<synchronous>, transform_indices = @transform_3, window_bounds = array<i64: 128, 128>}, {pipeline_mode = #tpu.pipeline_mode<synchronous>, transform_indices = @transform_4, window_bounds = array<i64: 1, 128>}, {transform_indices = @transform_5, window_bounds = array<i64: 16, 128>}]} {
    %c0_i32 = arith.constant 0 : i32
    %0 = arith.cmpi eq, %arg1, %c0_i32 : i32
    %1 = arith.extui %0 : i1 to i32
    %c0_i32_0 = arith.constant 0 : i32
    %2 = arith.cmpi ne, %1, %c0_i32_0 : i32
    scf.if %2 {
      %cst_15 = arith.constant 0.000000e+00 : f32
      %18 = vector.broadcast %cst_15 : f32 to vector<16x128xf32>
      %c0_16 = arith.constant 0 : index
      %c0_17 = arith.constant 0 : index
      %19 = vector.load %arg8[%c0_16, %c0_17] : memref<16x128xf32, #tpu.memory_space<vmem>>, vector<16x128xf32>
      tpu.vector_store %arg8[%c0_16, %c0_17], %18 {strides = array<i32>} : memref<16x128xf32, #tpu.memory_space<vmem>>, vector<16x128xf32>,
    } else {
    }
    %c0 = arith.constant 0 : index
    %c0_1 = arith.constant 0 : index
    %3 = vector.load %arg2[%c0, %c0_1] : memref<16x128xbf16, #tpu.memory_space<vmem>>, vector<16x128xbf16>
    %c0_2 = arith.constant 0 : index
    %c0_3 = arith.constant 0 : index
    %4 = vector.load %arg3[%c0_2, %c0_3] : memref<128x128xbf16, #tpu.memory_space<vmem>>, vector<128x128xbf16>
    %cst = arith.constant dense<0.000000e+00> : vector<16x128xf32>
    %5 = tpu.matmul %3, %4, %cst {dimension_numbers = #tpu.dot_dimension_numbers<[1], [0], [0], [1], [0, 0, 1, 1], [], []>} : vector<16x128xbf16>, vector<128x128xbf16>, vector<16x128xf32> -> vector<16x128xf32>
    %c0_4 = arith.constant 0 : index
    %c0_5 = arith.constant 0 : index
    %6 = vector.load %arg4[%c0_4, %c0_5] : memref<1x128xf32, #tpu.memory_space<vmem>>, vector<1x128xf32>
    %7 = vector.broadcast %6 : vector<1x128xf32> to vector<16x128xf32>
    %8 = arith.addf %5, %7 : vector<16x128xf32>
    %c0_6 = arith.constant 0 : index
    %c0_7 = arith.constant 0 : index
    %9 = vector.load %arg8[%c0_6, %c0_7] : memref<16x128xf32, #tpu.memory_space<vmem>>, vector<16x128xf32>
    %10 = arith.truncf %8 : vector<16x128xf32> to vector<16x128xbf16>
    %c0_8 = arith.constant 0 : index
    %c0_9 = arith.constant 0 : index
    %11 = vector.load %arg5[%c0_8, %c0_9] : memref<128x128xbf16, #tpu.memory_space<vmem>>, vector<128x128xbf16>
    %cst_10 = arith.constant dense<0.000000e+00> : vector<16x128xf32>
    %12 = tpu.matmul %10, %11, %cst_10 {dimension_numbers = #tpu.dot_dimension_numbers<[1], [0], [0], [1], [0, 0, 1, 1], [], []>} : vector<16x128xbf16>, vector<128x128xbf16>, vector<16x128xf32> -> vector<16x128xf32>
    %13 = arith.addf %9, %12 : vector<16x128xf32>
    %c0_11 = arith.constant 0 : index
    %c0_12 = arith.constant 0 : index
    %14 = vector.load %arg8[%c0_11, %c0_12] : memref<16x128xf32, #tpu.memory_space<vmem>>, vector<16x128xf32>
    tpu.vector_store %arg8[%c0_11, %c0_12], %13 {strides = array<i32>} : memref<16x128xf32, #tpu.memory_space<vmem>>, vector<16x128xf32>,
    %c0_i32_13 = arith.constant 0 : i32
    %15 = arith.cmpi eq, %arg1, %c0_i32_13 : i32
    %16 = arith.extui %15 : i1 to i32
    %c0_i32_14 = arith.constant 0 : i32
    %17 = arith.cmpi ne, %16, %c0_i32_14 : i32
    scf.if %17 {
      %c0_15 = arith.constant 0 : index
      %c0_16 = arith.constant 0 : index
      %18 = vector.load %arg8[%c0_15, %c0_16] : memref<16x128xf32, #tpu.memory_space<vmem>>, vector<16x128xf32>
      %c0_17 = arith.constant 0 : index
      %c0_18 = arith.constant 0 : index
      %19 = vector.load %arg6[%c0_17, %c0_18] : memref<1x128xf32, #tpu.memory_space<vmem>>, vector<1x128xf32>
      %20 = vector.broadcast %19 : vector<1x128xf32> to vector<16x128xf32>
      %21 = arith.addf %18, %20 : vector<16x128xf32>
      %c0_19 = arith.constant 0 : index
      %c0_20 = arith.constant 0 : index
      %22 = vector.load %arg7[%c0_19, %c0_20] : memref<16x128xf32, #tpu.memory_space<vmem>>, vector<16x128xf32>
      tpu.vector_store %arg7[%c0_19, %c0_20], %21 {strides = array<i32>} : memref<16x128xf32, #tpu.memory_space<vmem>>, vector<16x128xf32>,
    } else {
    }
    return
  }
  func.func @transform_0(%arg0: i32, %arg1: i32) -> (i32, i32) {
    %c0_i32 = arith.constant 0 : i32
    %c0_i32_0 = arith.constant 0 : i32
    return %arg0, %c0_i32 : i32, i32
  }
  func.func @transform_1(%arg0: i32, %arg1: i32) -> (i32, i32) {
    %c0_i32 = arith.constant 0 : i32
    %c0_i32_0 = arith.constant 0 : i32
    return %c0_i32, %arg1 : i32, i32
  }
  func.func @transform_2(%arg0: i32, %arg1: i32) -> (i32, i32) {
    %c0_i32 = arith.constant 0 : i32
    %c0_i32_0 = arith.constant 0 : i32
    return %c0_i32, %arg1 : i32, i32
  }
  func.func @transform_3(%arg0: i32, %arg1: i32) -> (i32, i32) {
    %c0_i32 = arith.constant 0 : i32
    %c0_i32_0 = arith.constant 0 : i32
    return %arg1, %c0_i32 : i32, i32
  }
  func.func @transform_4(%arg0: i32, %arg1: i32) -> (i32, i32) {
    %c0_i32 = arith.constant 0 : i32
    %c0_i32_0 = arith.constant 0 : i32
    %c0_i32_1 = arith.constant 0 : i32
    return %c0_i32, %c0_i32_0 : i32, i32
  }
  func.func @transform_5(%arg0: i32, %arg1: i32) -> (i32, i32) {
    %c0_i32 = arith.constant 0 : i32
    %c0_i32_0 = arith.constant 0 : i32
    return %arg0, %c0_i32 : i32, i32
  }
}

module attributes {stable_mosaic.version = 11 : i64} {
  func.func @_mlp_kernel(%arg0: i32, %arg1: i32, %arg2: memref<16x128xbf16, #tpu.memory_space<vmem>>, %arg3: memref<128x128xbf16, #tpu.memory_space<vmem>>, %arg4: memref<1x128xf32, #tpu.memory_space<vmem>>, %arg5: memref<128x128xbf16, #tpu.memory_space<vmem>>, %arg6: memref<1x128xf32, #tpu.memory_space<vmem>>, %arg7: memref<16x128xf32, #tpu.memory_space<vmem>>, %arg8: memref<16x128xf32, #tpu.memory_space<vmem>>) attributes {dimension_semantics = [#tpu.dimension_semantics<parallel>, #tpu.dimension_semantics<arbitrary>], iteration_bounds = array<i64: 1, 1>, scalar_prefetch = 0 : i64, scratch_operands = 1 : i64, tpu.core_type = #tpu.core_type<tc>, window_params = [{transform_indices = @transform_0, window_bounds = array<i64: 16, 128>}, {transform_indices = @transform_1, window_bounds = array<i64: 128, 128>}, {transform_indices = @transform_2, window_bounds = array<i64: 1, 128>}, {transform_indices = @transform_3, window_bounds = array<i64: 128, 128>}, {pipeline_mode = #tpu.pipeline_mode<synchronous>, transform_indices = @transform_4, window_bounds = array<i64: 1, 128>}, {transform_indices = @transform_5, window_bounds = array<i64: 16, 128>}]} {
    %c0_i32 = arith.constant 0 : i32
    %0 = arith.cmpi eq, %arg1, %c0_i32 : i32
    %1 = arith.extui %0 : i1 to i32
    %c0_i32_0 = arith.constant 0 : i32
    %2 = arith.cmpi ne, %1, %c0_i32_0 : i32
    scf.if %2 {
      %cst_15 = arith.constant 0.000000e+00 : f32
      %18 = vector.broadcast %cst_15 : f32 to vector<16x128xf32>
      %c0_16 = arith.constant 0 : index
      %c0_17 = arith.constant 0 : index
      %19 = vector.load %arg8[%c0_16, %c0_17] : memref<16x128xf32, #tpu.memory_space<vmem>>, vector<16x128xf32>
      tpu.vector_store %arg8[%c0_16, %c0_17], %18 {strides = array<i32>} : memref<16x128xf32, #tpu.memory_space<vmem>>, vector<16x128xf32>,
    } else {
    }
    %c0 = arith.constant 0 : index
    %c0_1 = arith.constant 0 : index
    %3 = vector.load %arg2[%c0, %c0_1] : memref<16x128xbf16, #tpu.memory_space<vmem>>, vector<16x128xbf16>
    %c0_2 = arith.constant 0 : index
    %c0_3 = arith.constant 0 : index
    %4 = vector.load %arg3[%c0_2, %c0_3] : memref<128x128xbf16, #tpu.memory_space<vmem>>, vector<128x128xbf16>
    %cst = arith.constant dense<0.000000e+00> : vector<16x128xf32>
    %5 = tpu.matmul %3, %4, %cst {dimension_numbers = #tpu.dot_dimension_numbers<[1], [0], [0], [1], [0, 0, 1, 1], [], []>} : vector<16x128xbf16>, vector<128x128xbf16>, vector<16x128xf32> -> vector<16x128xf32>
    %c0_4 = arith.constant 0 : index
    %c0_5 = arith.constant 0 : index
    %6 = vector.load %arg4[%c0_4, %c0_5] : memref<1x128xf32, #tpu.memory_space<vmem>>, vector<1x128xf32>
    %7 = vector.broadcast %6 : vector<1x128xf32> to vector<16x128xf32>
    %8 = arith.addf %5, %7 : vector<16x128xf32>
    %c0_6 = arith.constant 0 : index
    %c0_7 = arith.constant 0 : index
    %9 = vector.load %arg8[%c0_6, %c0_7] : memref<16x128xf32, #tpu.memory_space<vmem>>, vector<16x128xf32>
    %10 = arith.truncf %8 : vector<16x128xf32> to vector<16x128xbf16>
    %c0_8 = arith.constant 0 : index
    %c0_9 = arith.constant 0 : index
    %11 = vector.load %arg5[%c0_8, %c0_9] : memref<128x128xbf16, #tpu.memory_space<vmem>>, vector<128x128xbf16>
    %cst_10 = arith.constant dense<0.000000e+00> : vector<16x128xf32>
    %12 = tpu.matmul %10, %11, %cst_10 {dimension_numbers = #tpu.dot_dimension_numbers<[1], [0], [0], [1], [0, 0, 1, 1], [], []>} : vector<16x128xbf16>, vector<128x128xbf16>, vector<16x128xf32> -> vector<16x128xf32>
    %13 = arith.addf %9, %12 : vector<16x128xf32>
    %c0_11 = arith.constant 0 : index
    %c0_12 = arith.constant 0 : index
    %14 = vector.load %arg8[%c0_11, %c0_12] : memref<16x128xf32, #tpu.memory_space<vmem>>, vector<16x128xf32>
    tpu.vector_store %arg8[%c0_11, %c0_12], %13 {strides = array<i32>} : memref<16x128xf32, #tpu.memory_space<vmem>>, vector<16x128xf32>,
    %c0_i32_13 = arith.constant 0 : i32
    %15 = arith.cmpi eq, %arg1, %c0_i32_13 : i32
    %16 = arith.extui %15 : i1 to i32
    %c0_i32_14 = arith.constant 0 : i32
    %17 = arith.cmpi ne, %16, %c0_i32_14 : i32
    scf.if %17 {
      %c0_15 = arith.constant 0 : index
      %c0_16 = arith.constant 0 : index
      %18 = vector.load %arg8[%c0_15, %c0_16] : memref<16x128xf32, #tpu.memory_space<vmem>>, vector<16x128xf32>
      %c0_17 = arith.constant 0 : index
      %c0_18 = arith.constant 0 : index
      %19 = vector.load %arg6[%c0_17, %c0_18] : memref<1x128xf32, #tpu.memory_space<vmem>>, vector<1x128xf32>
      %20 = vector.broadcast %19 : vector<1x128xf32> to vector<16x128xf32>
      %21 = arith.addf %18, %20 : vector<16x128xf32>
      %c0_19 = arith.constant 0 : index
      %c0_20 = arith.constant 0 : index
      %22 = vector.load %arg7[%c0_19, %c0_20] : memref<16x128xf32, #tpu.memory_space<vmem>>, vector<16x128xf32>
      tpu.vector_store %arg7[%c0_19, %c0_20], %21 {strides = array<i32>} : memref<16x128xf32, #tpu.memory_space<vmem>>, vector<16x128xf32>,
    } else {
    }
    return
  }
  func.func @transform_0(%arg0: i32, %arg1: i32) -> (i32, i32) {
    %c0_i32 = arith.constant 0 : i32
    %c0_i32_0 = arith.constant 0 : i32
    return %arg0, %c0_i32 : i32, i32
  }
  func.func @transform_1(%arg0: i32, %arg1: i32) -> (i32, i32) {
    %c0_i32 = arith.constant 0 : i32
    %c0_i32_0 = arith.constant 0 : i32
    return %c0_i32, %arg1 : i32, i32
  }
  func.func @transform_2(%arg0: i32, %arg1: i32) -> (i32, i32) {
    %c0_i32 = arith.constant 0 : i32
    %c0_i32_0 = arith.constant 0 : i32
    return %c0_i32, %arg1 : i32, i32
  }
  func.func @transform_3(%arg0: i32, %arg1: i32) -> (i32, i32) {
    %c0_i32 = arith.constant 0 : i32
    %c0_i32_0 = arith.constant 0 : i32
    return %arg1, %c0_i32 : i32, i32
  }
  func.func @transform_4(%arg0: i32, %arg1: i32) -> (i32, i32) {
    %c0_i32 = arith.constant 0 : i32
    %c0_i32_0 = arith.constant 0 : i32
    %c0_i32_1 = arith.constant 0 : i32
    return %c0_i32, %c0_i32_0 : i32, i32
  }
  func.func @transform_5(%arg0: i32, %arg1: i32) -> (i32, i32) {
    %c0_i32 = arith.constant 0 : i32
    %c0_i32_0 = arith.constant 0 : i32
    return %arg0, %c0_i32 : i32, i32
  }
}

</mosaic_0001>

<llo_original>
// kernel: tpu_custom_call.1
$region0: #{tpu_custom_call.1}
  #allocation0 [shape = 'u32[]', space=smem, size = 0x4, offset = 0x4, fixed_abs, tag = 'smem constant byte address 0x4 - core index']
  #allocation1 [shape = 'u32[144,128]{1,0:T(1,128)}', space=vmem, size = 0x12000, scoped, tag = 'internal scratch']
  #allocation2 [shape = 'f32[16,128]{1,0:T(8,128)}', space=vmem, size = 0x2000, scoped, tag = 'scratch operand']
  %s0 = inlined_call_operand.hbm [shape: bf16[16,128], index: 0, kind: input, shape index: {}]
  %s1 = inlined_call_operand.hbm [shape: bf16[128,128], index: 1, kind: input, shape index: {}]
  %s2 = inlined_call_operand.vmem [shape: f32[1,128], index: 2, kind: input, shape index: {}]
  %s3 = inlined_call_operand.hbm [shape: bf16[128,128], index: 3, kind: input, shape index: {}]
  %s4 = inlined_call_operand.vmem [shape: f32[1,128], index: 4, kind: input, shape index: {}]
  %s5 = inlined_call_operand.hbm [shape: f32[16,128], index: 5, kind: output, shape index: {}]
  %s6 = sld [smem:[#allocation0]]
  $region50: #{tpu_custom_call.1} parent=0
    _
  %s8 = ssub.s32 1, %s6
  %s9 = scalar_select 0, %s8, %s6
  $region1: #{tpu_custom_call.1} parent=0
    #allocation3 [shape = 'u8[4096]{0}', space=vmem, size = 0x1000, scoped, tag = 'input window, operand 0, single buffered']
    #allocation4 [shape = 's32[1]{0}', space=sflag, size = 0x4, scoped, tag = 'scoped memory for tpu_custom_call.1']
    #allocation5 [shape = 's32[1]{0}', space=sflag, size = 0x4, scoped, tag = 'scoped memory for tpu_custom_call.1']
    #allocation6 [shape = 'u8[32768]{0}', space=vmem, size = 0x8000, scoped, tag = 'input window, operand 1, single buffered']
    #allocation7 [shape = 's32[1]{0}', space=sflag, size = 0x4, scoped, tag = 'scoped memory for tpu_custom_call.1']
    #allocation8 [shape = 'u8[32768]{0}', space=vmem, size = 0x8000, scoped, tag = 'input window, operand 3, single buffered']
    #allocation9 [shape = 'u8[8192]{0}', space=vmem, size = 0x2000, scoped, tag = 'output window, operand 0, single buffered']
    %10 = vsyncpa [#allocation4], 0
    %11 = vsyncpa [#allocation7], 0
    %12 = vsyncpa [#allocation5], 0
    // Predicated region
    $region2: #{tpu_custom_call.1} parent=1 // pred_check
      _
    $region3: #{tpu_custom_call.1} parent=1 // pred_check_branch
      %14 = sbr.rel (0) target = $region5
    $region4: #{tpu_custom_call.1} parent=1 // pred_region
      %s16 = ssub.s32 128, 128
      %17 = vsyncadd [#allocation4], %s16
      %s18 = sshll.u32 [#allocation3], 4
      %s19 = int_to_ptr.vmem [resolvable:$true] %s18
      %24 = dma.hbm_to_vmem [thread:$0]  %s0, 128, %s19, [#allocation4], 64, 64, 4
    $region5: #{tpu_custom_call.1} parent=1 // pred_fallthru
      _
    // Predicated region
    $region6: #{tpu_custom_call.1} parent=1 // pred_check
      _
    $region7: #{tpu_custom_call.1} parent=1 // pred_check_branch
      %26 = sbr.rel (0) target = $region9
    $region8: #{tpu_custom_call.1} parent=1 // pred_region
      %s28 = ssub.s32 1024, 1024
      %29 = vsyncadd [#allocation7], %s28
      %s30 = sshll.u32 [#allocation6], 4
      %s31 = int_to_ptr.vmem [resolvable:$true] %s30
      %36 = dma.hbm_to_vmem [thread:$0]  %s1, 1024, %s31, [#allocation7], 64, 64, 4
    $region9: #{tpu_custom_call.1} parent=1 // pred_fallthru
      _
    // Predicated region
    $region10: #{tpu_custom_call.1} parent=1 // pred_check
      _
    $region11: #{tpu_custom_call.1} parent=1 // pred_check_branch
      %38 = sbr.rel (0) target = $region13
    $region12: #{tpu_custom_call.1} parent=1 // pred_region
      _
    $region13: #{tpu_custom_call.1} parent=1 // pred_fallthru
      _
    // Predicated region
    $region14: #{tpu_custom_call.1} parent=1 // pred_check
      _
    $region15: #{tpu_custom_call.1} parent=1 // pred_check_branch
      %40 = sbr.rel (0) target = $region17
    $region16: #{tpu_custom_call.1} parent=1 // pred_region
      %s42 = ssub.s32 1024, 1024
      %43 = vsyncadd [#allocation7], %s42
      %s44 = sshll.u32 [#allocation8], 4
      %s45 = int_to_ptr.vmem [resolvable:$true] %s44
      %50 = dma.hbm_to_vmem [thread:$0]  %s3, 1024, %s45, [#allocation7], 64, 64, 4
    $region17: #{tpu_custom_call.1} parent=1 // pred_fallthru
      _
    // Predicated region
    $region18: #{tpu_custom_call.1} parent=1 // pred_check
      _
    $region19: #{tpu_custom_call.1} parent=1 // pred_check_branch
      %52 = sbr.rel (0) target = $region21
    $region20: #{tpu_custom_call.1} parent=1 // pred_region
      _
    $region21: #{tpu_custom_call.1} parent=1 // pred_fallthru
      _
    // Predicated region
    $region22: #{tpu_custom_call.1} parent=1 // pred_check
      _
    $region23: #{tpu_custom_call.1} parent=1 // pred_check_branch
      %54 = sbr.rel (0) target = $region25
    $region24: #{tpu_custom_call.1} parent=1 // pred_region
      %55 = dma.done [#allocation4], 128
    $region25: #{tpu_custom_call.1} parent=1 // pred_fallthru
      _
    // Predicated region
    $region26: #{tpu_custom_call.1} parent=1 // pred_check
      _
    $region27: #{tpu_custom_call.1} parent=1 // pred_check_branch
      %57 = sbr.rel (0) target = $region29
    $region28: #{tpu_custom_call.1} parent=1 // pred_region
      %58 = dma.done [#allocation7], 1024
    $region29: #{tpu_custom_call.1} parent=1 // pred_fallthru
      _
    // Predicated region
    $region30: #{tpu_custom_call.1} parent=1 // pred_check
      _
    $region31: #{tpu_custom_call.1} parent=1 // pred_check_branch
      %60 = sbr.rel (0) target = $region33
    $region32: #{tpu_custom_call.1} parent=1 // pred_region
      %61 = dma.done [#allocation7], 1024
    $region33: #{tpu_custom_call.1} parent=1 // pred_fallthru
      _
    %p63 = scmp.eq.s32.totalorder 0, 0
    // Predicated region
    $region34: #{tpu_custom_call.1} parent=1 // pred_check
      %p64 = pneg %p63
    $region35: #{tpu_custom_call.1} parent=1 // pred_check_branch
      %66 = sbr.rel (%p64) target = $region37
    $region36: #{tpu_custom_call.1} parent=1 // pred_region
      %67 = vst [vmem:[#allocation2] sm:$0xff] 0.0
      %68 = vst [vmem:[#allocation2 + $0x8] sm:$0xff] 0.0
    $region37: #{tpu_custom_call.1} parent=1 // pred_fallthru
      _
    %v69 = vld [vmem:[#allocation3] sm:$0xf]
    %v70 = vld [vmem:[#allocation3 + $0x4] sm:$0xf]
    %v71 = vld [vmem:[#allocation6] sm:$0xf]
    %v72 = vld [vmem:[#allocation6 + $0x4] sm:$0xf]
    %v73 = vld [vmem:[#allocation6 + $0x8] sm:$0xf]
    %v74 = vld [vmem:[#allocation6 + $0xc] sm:$0xf]
    %v75 = vld [vmem:[#allocation6 + $0x10] sm:$0xf]
    %v76 = vld [vmem:[#allocation6 + $0x14] sm:$0xf]
    %v77 = vld [vmem:[#allocation6 + $0x18] sm:$0xf]
    %v78 = vld [vmem:[#allocation6 + $0x1c] sm:$0xf]
    %v79 = vld [vmem:[#allocation6 + $0x20] sm:$0xf]
    %v80 = vld [vmem:[#allocation6 + $0x24] sm:$0xf]
    %v81 = vld [vmem:[#allocation6 + $0x28] sm:$0xf]
    %v82 = vld [vmem:[#allocation6 + $0x2c] sm:$0xf]
    %v83 = vld [vmem:[#allocation6 + $0x30] sm:$0xf]
    %v84 = vld [vmem:[#allocation6 + $0x34] sm:$0xf]
    %v85 = vld [vmem:[#allocation6 + $0x38] sm:$0xf]
    %v86 = vld [vmem:[#allocation6 + $0x3c] sm:$0xf]
    %v87 = vld [vmem:[%s2] sm:$0x1]
    %v89 = vlaneseq
    %v90 = vshrl.u32 %v89, 7
    %v91 = vsub.s32 0, %v90
    %v92 = vrot.slane %v87, %v91
    %v96 = vunpack.c.l.b16 %v69
    %v97 = vunpack.c.l.b16 %v70
    %v98 = vpack.c.b16 %v97, %v96
    %v116 = vunpack.c.l.b16 %v71
    %v117 = vunpack.c.l.b16 %v72
    %v118 = vunpack.c.l.b16 %v73
    %v119 = vunpack.c.l.b16 %v74
    %v120 = vunpack.c.l.b16 %v75
    %v121 = vunpack.c.l.b16 %v76
    %v122 = vunpack.c.l.b16 %v77
    %v123 = vunpack.c.l.b16 %v78
    %v124 = vunpack.c.l.b16 %v79
    %v125 = vunpack.c.l.b16 %v80
    %v126 = vunpack.c.l.b16 %v81
    %v127 = vunpack.c.l.b16 %v82
    %v128 = vunpack.c.l.b16 %v83
    %v129 = vunpack.c.l.b16 %v84
    %v130 = vunpack.c.l.b16 %v85
    %v131 = vunpack.c.l.b16 %v86
    %v132 = vpack.c.b16 %v117, %v116
    %v133 = vpack.c.b16 %v119, %v118
    %v134 = vpack.c.b16 %v121, %v120
    %v135 = vpack.c.b16 %v123, %v122
    %v136 = vpack.c.b16 %v125, %v124
    %v137 = vpack.c.b16 %v127, %v126
    %v138 = vpack.c.b16 %v129, %v128
    %v139 = vpack.c.b16 %v131, %v130
    %148 = vmatprep.subr.bf16.mxu0 0
    %149 = vmatpush1.bf16.msra.mxu0 %v139
    %150 = vmatprep.subr.bf16.mxu0 0
    %151 = vmatpush1.bf16.msra.mxu0 %v138
    %152 = vmatprep.subr.bf16.mxu0 0
    %153 = vmatpush1.bf16.msra.mxu0 %v137
    %154 = vmatprep.subr.bf16.mxu0 0
    %155 = vmatpush1.bf16.msra.mxu0 %v136
    %156 = vmatprep.subr.bf16.mxu0 0
    %157 = vmatpush1.bf16.msra.mxu0 %v135
    %158 = vmatprep.subr.bf16.mxu0 0
    %159 = vmatpush1.bf16.msra.mxu0 %v134
    %160 = vmatprep.subr.bf16.mxu0 0
    %161 = vmatpush1.bf16.msra.mxu0 %v133
    %162 = vmatprep.subr.bf16.mxu0 0
    %163 = vmatpush1.bf16.msra.mxu0 %v132
    %164 = vmatprep.subr.bf16.mxu0 0
    %165 = vmatpush2.bf16.msra.mxu0 0
    %166 = vmatprep.subr.bf16.mxu0 0
    %167 = vmatpush2.bf16.msra.mxu0 0
    %168 = vmatprep.subr.bf16.mxu0 0
    %169 = vmatpush2.bf16.msra.mxu0 0
    %170 = vmatprep.subr.bf16.mxu0 0
    %171 = vmatpush2.bf16.msra.mxu0 0
    %172 = vmatprep.subr.bf16.mxu0 0
    %173 = vmatpush2.bf16.msra.mxu0 0
    %174 = vmatprep.subr.bf16.mxu0 0
    %175 = vmatpush2.bf16.msra.mxu0 0
    %176 = vmatprep.subr.bf16.mxu0 0
    %177 = vmatpush2.bf16.msra.mxu0 0
    %178 = vmatprep.subr.bf16.mxu0 0
    %179 = vmatpush2.bf16.msra.mxu0 0
    %180 = vmatprep.mubr.bf16.mxu0 0
    %181 = vmatmul.mubr.bf16.gmra.mxu0 %v98
    %v182 = vpop.f32.mrf.mxu0
    %v183 = vadd.f32 %v92, %v182
    %v184 = vpop.f32.mrf.mxu0
    %v185 = vpop.f32.mrf.mxu0
    %v186 = vadd.f32 %v92, %v185
    %v187 = vpop.f32.mrf.mxu0
    %188 = vdwg.mxu0
    %v189 = vld [vmem:[#allocation2] sm:$0xff]
    %v190 = vld [vmem:[#allocation2 + $0x8] sm:$0xff]
    %v191 = vpack.c.bf16 %v186, %v183
    %v192 = vld [vmem:[#allocation8] sm:$0xf]
    %v193 = vld [vmem:[#allocation8 + $0x4] sm:$0xf]
    %v194 = vld [vmem:[#allocation8 + $0x8] sm:$0xf]
    %v195 = vld [vmem:[#allocation8 + $0xc] sm:$0xf]
    %v196 = vld [vmem:[#allocation8 + $0x10] sm:$0xf]
    %v197 = vld [vmem:[#allocation8 + $0x14] sm:$0xf]
    %v198 = vld [vmem:[#allocation8 + $0x18] sm:$0xf]
    %v199 = vld [vmem:[#allocation8 + $0x1c] sm:$0xf]
    %v200 = vld [vmem:[#allocation8 + $0x20] sm:$0xf]
    %v201 = vld [vmem:[#allocation8 + $0x24] sm:$0xf]
    %v202 = vld [vmem:[#allocation8 + $0x28] sm:$0xf]
    %v203 = vld [vmem:[#allocation8 + $0x2c] sm:$0xf]
    %v204 = vld [vmem:[#allocation8 + $0x30] sm:$0xf]
    %v205 = vld [vmem:[#allocation8 + $0x34] sm:$0xf]
    %v206 = vld [vmem:[#allocation8 + $0x38] sm:$0xf]
    %v207 = vld [vmem:[#allocation8 + $0x3c] sm:$0xf]
    %v224 = vunpack.c.l.b16 %v192
    %v225 = vunpack.c.l.b16 %v193
    %v226 = vunpack.c.l.b16 %v194
    %v227 = vunpack.c.l.b16 %v195
    %v228 = vunpack.c.l.b16 %v196
    %v229 = vunpack.c.l.b16 %v197
    %v230 = vunpack.c.l.b16 %v198
    %v231 = vunpack.c.l.b16 %v199
    %v232 = vunpack.c.l.b16 %v200
    %v233 = vunpack.c.l.b16 %v201
    %v234 = vunpack.c.l.b16 %v202
    %v235 = vunpack.c.l.b16 %v203
    %v236 = vunpack.c.l.b16 %v204
    %v237 = vunpack.c.l.b16 %v205
    %v238 = vunpack.c.l.b16 %v206
    %v239 = vunpack.c.l.b16 %v207
    %v240 = vpack.c.b16 %v225, %v224
    %v241 = vpack.c.b16 %v227, %v226
    %v242 = vpack.c.b16 %v229, %v228
    %v243 = vpack.c.b16 %v231, %v230
    %v244 = vpack.c.b16 %v233, %v232
    %v245 = vpack.c.b16 %v235, %v234
    %v246 = vpack.c.b16 %v237, %v236
    %v247 = vpack.c.b16 %v239, %v238
    %256 = vmatprep.subr.bf16.mxu0 0
    %257 = vmatpush1.bf16.msra.mxu0 %v247
    %258 = vmatprep.subr.bf16.mxu0 0
    %259 = vmatpush1.bf16.msra.mxu0 %v246
    %260 = vmatprep.subr.bf16.mxu0 0
    %261 = vmatpush1.bf16.msra.mxu0 %v245
    %262 = vmatprep.subr.bf16.mxu0 0
    %263 = vmatpush1.bf16.msra.mxu0 %v244
    %264 = vmatprep.subr.bf16.mxu0 0
    %265 = vmatpush1.bf16.msra.mxu0 %v243
    %266 = vmatprep.subr.bf16.mxu0 0
    %267 = vmatpush1.bf16.msra.mxu0 %v242
    %268 = vmatprep.subr.bf16.mxu0 0
    %269 = vmatpush1.bf16.msra.mxu0 %v241
    %270 = vmatprep.subr.bf16.mxu0 0
    %271 = vmatpush1.bf16.msra.mxu0 %v240
    %272 = vmatprep.subr.bf16.mxu0 0
    %273 = vmatpush2.bf16.msra.mxu0 0
    %274 = vmatprep.subr.bf16.mxu0 0
    %275 = vmatpush2.bf16.msra.mxu0 0
    %276 = vmatprep.subr.bf16.mxu0 0
    %277 = vmatpush2.bf16.msra.mxu0 0
    %278 = vmatprep.subr.bf16.mxu0 0
    %279 = vmatpush2.bf16.msra.mxu0 0
    %280 = vmatprep.subr.bf16.mxu0 0
    %281 = vmatpush2.bf16.msra.mxu0 0
    %282 = vmatprep.subr.bf16.mxu0 0
    %283 = vmatpush2.bf16.msra.mxu0 0
    %284 = vmatprep.subr.bf16.mxu0 0
    %285 = vmatpush2.bf16.msra.mxu0 0
    %286 = vmatprep.subr.bf16.mxu0 0
    %287 = vmatpush2.bf16.msra.mxu0 0
    %288 = vmatprep.mubr.bf16.mxu0 0
    %289 = vmatmul.mubr.bf16.gmra.mxu0 %v191
    %v290 = vpop.f32.mrf.mxu0
    %v291 = vadd.f32 0.0, %v290
    %v292 = vpop.f32.mrf.mxu0
    %v293 = vpop.f32.mrf.mxu0
    %v294 = vadd.f32 0.0, %v293
    %v295 = vpop.f32.mrf.mxu0
    %296 = vdwg.mxu0
    %v297 = vadd.f32 %v189, %v291
    %v298 = vadd.f32 %v190, %v294
    %299 = vst [vmem:[#allocation2] sm:$0xff] %v297
    %300 = vst [vmem:[#allocation2 + $0x8] sm:$0xff] %v298
    // Predicated region
    $region38: #{tpu_custom_call.1} parent=1 // pred_check
      %p301 = pneg %p63
    $region39: #{tpu_custom_call.1} parent=1 // pred_check_branch
      %303 = sbr.rel (%p301) target = $region41
    $region40: #{tpu_custom_call.1} parent=1 // pred_region
      %v304 = vld [vmem:[#allocation2] sm:$0xff]
      %v305 = vld [vmem:[#allocation2 + $0x8] sm:$0xff]
      %v306 = vld [vmem:[%s4] sm:$0x1]
      %v308 = vlaneseq
      %v309 = vshrl.u32 %v308, 7
      %v310 = vsub.s32 0, %v309
      %v311 = vrot.slane %v306, %v310
      %v313 = vadd.f32 %v304, %v311
      %v314 = vadd.f32 %v305, %v311
      %315 = vst [vmem:[#allocation9] sm:$0xff] %v313
      %316 = vst [vmem:[#allocation9 + $0x8] sm:$0xff] %v314
    $region41: #{tpu_custom_call.1} parent=1 // pred_fallthru
      _
    // Predicated region
    $region42: #{tpu_custom_call.1} parent=1 // pred_check
      _
    $region43: #{tpu_custom_call.1} parent=1 // pred_check_branch
      %318 = sbr.rel (0) target = $region45
    $region44: #{tpu_custom_call.1} parent=1 // pred_region
      %s320 = ssub.s32 256, 256
      %321 = vsyncadd [#allocation5], %s320
      %s322 = sshll.u32 [#allocation9], 4
      %s323 = int_to_ptr.vmem [resolvable:$true] %s322
      %328 = dma.vmem_to_hbm [thread:$0]  %s323, 256, %s5, [#allocation5], 128, 128, 8
    $region45: #{tpu_custom_call.1} parent=1 // pred_fallthru
      _
    // Predicated region
    $region46: #{tpu_custom_call.1} parent=1 // pred_check
      _
    $region47: #{tpu_custom_call.1} parent=1 // pred_check_branch
      %330 = sbr.rel (0) target = $region49
    $region48: #{tpu_custom_call.1} parent=1 // pred_region
      %331 = dma.done [#allocation5], 256
    $region49: #{tpu_custom_call.1} parent=1 // pred_fallthru
      _
    %332 = vsyncpa [#allocation4], 1
    %333 = vsyncpa [#allocation7], 1
    %334 = vsyncpa [#allocation5], 1

// kernel: tpu_custom_call.1
$region0: #{tpu_custom_call.1}
  #allocation0 [shape = 'u32[]', space=smem, size = 0x4, offset = 0x4, fixed_abs, tag = 'smem constant byte address 0x4 - core index']
  #allocation1 [shape = 'u32[144,128]{1,0:T(1,128)}', space=vmem, size = 0x12000, scoped, tag = 'internal scratch']
  #allocation2 [shape = 'f32[16,128]{1,0:T(8,128)}', space=vmem, size = 0x2000, scoped, tag = 'scratch operand']
  %s0 = inlined_call_operand.hbm [shape: bf16[16,128], index: 0, kind: input, shape index: {}]
  %s1 = inlined_call_operand.hbm [shape: bf16[128,128], index: 1, kind: input, shape index: {}]
  %s2 = inlined_call_operand.vmem [shape: f32[1,128], index: 2, kind: input, shape index: {}]
  %s3 = inlined_call_operand.hbm [shape: bf16[128,128], index: 3, kind: input, shape index: {}]
  %s4 = inlined_call_operand.vmem [shape: f32[1,128], index: 4, kind: input, shape index: {}]
  %s5 = inlined_call_operand.hbm [shape: f32[16,128], index: 5, kind: output, shape index: {}]
  %s6 = sld [smem:[#allocation0]]
  $region50: #{tpu_custom_call.1} parent=0
    _
  %s8 = ssub.s32 1, %s6
  %s9 = scalar_select 0, %s8, %s6
  $region1: #{tpu_custom_call.1} parent=0
    #allocation3 [shape = 'u8[4096]{0}', space=vmem, size = 0x1000, scoped, tag = 'input window, operand 0, single buffered']
    #allocation4 [shape = 's32[1]{0}', space=sflag, size = 0x4, scoped, tag = 'scoped memory for tpu_custom_call.1']
    #allocation5 [shape = 's32[1]{0}', space=sflag, size = 0x4, scoped, tag = 'scoped memory for tpu_custom_call.1']
    #allocation6 [shape = 'u8[32768]{0}', space=vmem, size = 0x8000, scoped, tag = 'input window, operand 1, single buffered']
    #allocation7 [shape = 's32[1]{0}', space=sflag, size = 0x4, scoped, tag = 'scoped memory for tpu_custom_call.1']
    #allocation8 [shape = 'u8[32768]{0}', space=vmem, size = 0x8000, scoped, tag = 'input window, operand 3, single buffered']
    #allocation9 [shape = 'u8[8192]{0}', space=vmem, size = 0x2000, scoped, tag = 'output window, operand 0, single buffered']
    %10 = vsyncpa [#allocation4], 0
    %11 = vsyncpa [#allocation7], 0
    %12 = vsyncpa [#allocation5], 0
    // Predicated region
    $region2: #{tpu_custom_call.1} parent=1 // pred_check
      _
    $region3: #{tpu_custom_call.1} parent=1 // pred_check_branch
      %14 = sbr.rel (0) target = $region5
    $region4: #{tpu_custom_call.1} parent=1 // pred_region
      %s16 = ssub.s32 128, 128
      %17 = vsyncadd [#allocation4], %s16
      %s18 = sshll.u32 [#allocation3], 4
      %s19 = int_to_ptr.vmem [resolvable:$true] %s18
      %24 = dma.hbm_to_vmem [thread:$0]  %s0, 128, %s19, [#allocation4], 64, 64, 4
    $region5: #{tpu_custom_call.1} parent=1 // pred_fallthru
      _
    // Predicated region
    $region6: #{tpu_custom_call.1} parent=1 // pred_check
      _
    $region7: #{tpu_custom_call.1} parent=1 // pred_check_branch
      %26 = sbr.rel (0) target = $region9
    $region8: #{tpu_custom_call.1} parent=1 // pred_region
      %s28 = ssub.s32 1024, 1024
      %29 = vsyncadd [#allocation7], %s28
      %s30 = sshll.u32 [#allocation6], 4
      %s31 = int_to_ptr.vmem [resolvable:$true] %s30
      %36 = dma.hbm_to_vmem [thread:$0]  %s1, 1024, %s31, [#allocation7], 64, 64, 4
    $region9: #{tpu_custom_call.1} parent=1 // pred_fallthru
      _
    // Predicated region
    $region10: #{tpu_custom_call.1} parent=1 // pred_check
      _
    $region11: #{tpu_custom_call.1} parent=1 // pred_check_branch
      %38 = sbr.rel (0) target = $region13
    $region12: #{tpu_custom_call.1} parent=1 // pred_region
      _
    $region13: #{tpu_custom_call.1} parent=1 // pred_fallthru
      _
    // Predicated region
    $region14: #{tpu_custom_call.1} parent=1 // pred_check
      _
    $region15: #{tpu_custom_call.1} parent=1 // pred_check_branch
      %40 = sbr.rel (0) target = $region17
    $region16: #{tpu_custom_call.1} parent=1 // pred_region
      %s42 = ssub.s32 1024, 1024
      %43 = vsyncadd [#allocation7], %s42
      %s44 = sshll.u32 [#allocation8], 4
      %s45 = int_to_ptr.vmem [resolvable:$true] %s44
      %50 = dma.hbm_to_vmem [thread:$0]  %s3, 1024, %s45, [#allocation7], 64, 64, 4
    $region17: #{tpu_custom_call.1} parent=1 // pred_fallthru
      _
    // Predicated region
    $region18: #{tpu_custom_call.1} parent=1 // pred_check
      _
    $region19: #{tpu_custom_call.1} parent=1 // pred_check_branch
      %52 = sbr.rel (0) target = $region21
    $region20: #{tpu_custom_call.1} parent=1 // pred_region
      _
    $region21: #{tpu_custom_call.1} parent=1 // pred_fallthru
      _
    // Predicated region
    $region22: #{tpu_custom_call.1} parent=1 // pred_check
      _
    $region23: #{tpu_custom_call.1} parent=1 // pred_check_branch
      %54 = sbr.rel (0) target = $region25
    $region24: #{tpu_custom_call.1} parent=1 // pred_region
      %55 = dma.done [#allocation4], 128
    $region25: #{tpu_custom_call.1} parent=1 // pred_fallthru
      _
    // Predicated region
    $region26: #{tpu_custom_call.1} parent=1 // pred_check
      _
    $region27: #{tpu_custom_call.1} parent=1 // pred_check_branch
      %57 = sbr.rel (0) target = $region29
    $region28: #{tpu_custom_call.1} parent=1 // pred_region
      %58 = dma.done [#allocation7], 1024
    $region29: #{tpu_custom_call.1} parent=1 // pred_fallthru
      _
    // Predicated region
    $region30: #{tpu_custom_call.1} parent=1 // pred_check
      _
    $region31: #{tpu_custom_call.1} parent=1 // pred_check_branch
      %60 = sbr.rel (0) target = $region33
    $region32: #{tpu_custom_call.1} parent=1 // pred_region
      %61 = dma.done [#allocation7], 1024
    $region33: #{tpu_custom_call.1} parent=1 // pred_fallthru
      _
    %p63 = scmp.eq.s32.totalorder 0, 0
    // Predicated region
    $region34: #{tpu_custom_call.1} parent=1 // pred_check
      %p64 = pneg %p63
    $region35: #{tpu_custom_call.1} parent=1 // pred_check_branch
      %66 = sbr.rel (%p64) target = $region37
    $region36: #{tpu_custom_call.1} parent=1 // pred_region
      %67 = vst [vmem:[#allocation2] sm:$0xff] 0.0
      %68 = vst [vmem:[#allocation2 + $0x8] sm:$0xff] 0.0
    $region37: #{tpu_custom_call.1} parent=1 // pred_fallthru
      _
    %v69 = vld [vmem:[#allocation3] sm:$0xf]
    %v70 = vld [vmem:[#allocation3 + $0x4] sm:$0xf]
    %v71 = vld [vmem:[#allocation6] sm:$0xf]
    %v72 = vld [vmem:[#allocation6 + $0x4] sm:$0xf]
    %v73 = vld [vmem:[#allocation6 + $0x8] sm:$0xf]
    %v74 = vld [vmem:[#allocation6 + $0xc] sm:$0xf]
    %v75 = vld [vmem:[#allocation6 + $0x10] sm:$0xf]
    %v76 = vld [vmem:[#allocation6 + $0x14] sm:$0xf]
    %v77 = vld [vmem:[#allocation6 + $0x18] sm:$0xf]
    %v78 = vld [vmem:[#allocation6 + $0x1c] sm:$0xf]
    %v79 = vld [vmem:[#allocation6 + $0x20] sm:$0xf]
    %v80 = vld [vmem:[#allocation6 + $0x24] sm:$0xf]
    %v81 = vld [vmem:[#allocation6 + $0x28] sm:$0xf]
    %v82 = vld [vmem:[#allocation6 + $0x2c] sm:$0xf]
    %v83 = vld [vmem:[#allocation6 + $0x30] sm:$0xf]
    %v84 = vld [vmem:[#allocation6 + $0x34] sm:$0xf]
    %v85 = vld [vmem:[#allocation6 + $0x38] sm:$0xf]
    %v86 = vld [vmem:[#allocation6 + $0x3c] sm:$0xf]
    %v87 = vld [vmem:[%s2] sm:$0x1]
    %v89 = vlaneseq
    %v90 = vshrl.u32 %v89, 7
    %v91 = vsub.s32 0, %v90
    %v92 = vrot.slane %v87, %v91
    %v96 = vunpack.c.l.b16 %v69
    %v97 = vunpack.c.l.b16 %v70
    %v98 = vpack.c.b16 %v97, %v96
    %v116 = vunpack.c.l.b16 %v71
    %v117 = vunpack.c.l.b16 %v72
    %v118 = vunpack.c.l.b16 %v73
    %v119 = vunpack.c.l.b16 %v74
    %v120 = vunpack.c.l.b16 %v75
    %v121 = vunpack.c.l.b16 %v76
    %v122 = vunpack.c.l.b16 %v77
    %v123 = vunpack.c.l.b16 %v78
    %v124 = vunpack.c.l.b16 %v79
    %v125 = vunpack.c.l.b16 %v80
    %v126 = vunpack.c.l.b16 %v81
    %v127 = vunpack.c.l.b16 %v82
    %v128 = vunpack.c.l.b16 %v83
    %v129 = vunpack.c.l.b16 %v84
    %v130 = vunpack.c.l.b16 %v85
    %v131 = vunpack.c.l.b16 %v86
    %v132 = vpack.c.b16 %v117, %v116
    %v133 = vpack.c.b16 %v119, %v118
    %v134 = vpack.c.b16 %v121, %v120
    %v135 = vpack.c.b16 %v123, %v122
    %v136 = vpack.c.b16 %v125, %v124
    %v137 = vpack.c.b16 %v127, %v126
    %v138 = vpack.c.b16 %v129, %v128
    %v139 = vpack.c.b16 %v131, %v130
    %148 = vmatprep.subr.bf16.mxu0 0
    %149 = vmatpush1.bf16.msra.mxu0 %v139
    %150 = vmatprep.subr.bf16.mxu0 0
    %151 = vmatpush1.bf16.msra.mxu0 %v138
    %152 = vmatprep.subr.bf16.mxu0 0
    %153 = vmatpush1.bf16.msra.mxu0 %v137
    %154 = vmatprep.subr.bf16.mxu0 0
    %155 = vmatpush1.bf16.msra.mxu0 %v136
    %156 = vmatprep.subr.bf16.mxu0 0
    %157 = vmatpush1.bf16.msra.mxu0 %v135
    %158 = vmatprep.subr.bf16.mxu0 0
    %159 = vmatpush1.bf16.msra.mxu0 %v134
    %160 = vmatprep.subr.bf16.mxu0 0
    %161 = vmatpush1.bf16.msra.mxu0 %v133
    %162 = vmatprep.subr.bf16.mxu0 0
    %163 = vmatpush1.bf16.msra.mxu0 %v132
    %164 = vmatprep.subr.bf16.mxu0 0
    %165 = vmatpush2.bf16.msra.mxu0 0
    %166 = vmatprep.subr.bf16.mxu0 0
    %167 = vmatpush2.bf16.msra.mxu0 0
    %168 = vmatprep.subr.bf16.mxu0 0
    %169 = vmatpush2.bf16.msra.mxu0 0
    %170 = vmatprep.subr.bf16.mxu0 0
    %171 = vmatpush2.bf16.msra.mxu0 0
    %172 = vmatprep.subr.bf16.mxu0 0
    %173 = vmatpush2.bf16.msra.mxu0 0
    %174 = vmatprep.subr.bf16.mxu0 0
    %175 = vmatpush2.bf16.msra.mxu0 0
    %176 = vmatprep.subr.bf16.mxu0 0
    %177 = vmatpush2.bf16.msra.mxu0 0
    %178 = vmatprep.subr.bf16.mxu0 0
    %179 = vmatpush2.bf16.msra.mxu0 0
    %180 = vmatprep.mubr.bf16.mxu0 0
    %181 = vmatmul.mubr.bf16.gmra.mxu0 %v98
    %v182 = vpop.f32.mrf.mxu0
    %v183 = vadd.f32 %v92, %v182
    %v184 = vpop.f32.mrf.mxu0
    %v185 = vpop.f32.mrf.mxu0
    %v186 = vadd.f32 %v92, %v185
    %v187 = vpop.f32.mrf.mxu0
    %188 = vdwg.mxu0
    %v189 = vld [vmem:[#allocation2] sm:$0xff]
    %v190 = vld [vmem:[#allocation2 + $0x8] sm:$0xff]
    %v191 = vpack.c.bf16 %v186, %v183
    %v192 = vld [vmem:[#allocation8] sm:$0xf]
    %v193 = vld [vmem:[#allocation8 + $0x4] sm:$0xf]
    %v194 = vld [vmem:[#allocation8 + $0x8] sm:$0xf]
    %v195 = vld [vmem:[#allocation8 + $0xc] sm:$0xf]
    %v196 = vld [vmem:[#allocation8 + $0x10] sm:$0xf]
    %v197 = vld [vmem:[#allocation8 + $0x14] sm:$0xf]
    %v198 = vld [vmem:[#allocation8 + $0x18] sm:$0xf]
    %v199 = vld [vmem:[#allocation8 + $0x1c] sm:$0xf]
    %v200 = vld [vmem:[#allocation8 + $0x20] sm:$0xf]
    %v201 = vld [vmem:[#allocation8 + $0x24] sm:$0xf]
    %v202 = vld [vmem:[#allocation8 + $0x28] sm:$0xf]
    %v203 = vld [vmem:[#allocation8 + $0x2c] sm:$0xf]
    %v204 = vld [vmem:[#allocation8 + $0x30] sm:$0xf]
    %v205 = vld [vmem:[#allocation8 + $0x34] sm:$0xf]
    %v206 = vld [vmem:[#allocation8 + $0x38] sm:$0xf]
    %v207 = vld [vmem:[#allocation8 + $0x3c] sm:$0xf]
    %v224 = vunpack.c.l.b16 %v192
    %v225 = vunpack.c.l.b16 %v193
    %v226 = vunpack.c.l.b16 %v194
    %v227 = vunpack.c.l.b16 %v195
    %v228 = vunpack.c.l.b16 %v196
    %v229 = vunpack.c.l.b16 %v197
    %v230 = vunpack.c.l.b16 %v198
    %v231 = vunpack.c.l.b16 %v199
    %v232 = vunpack.c.l.b16 %v200
    %v233 = vunpack.c.l.b16 %v201
    %v234 = vunpack.c.l.b16 %v202
    %v235 = vunpack.c.l.b16 %v203
    %v236 = vunpack.c.l.b16 %v204
    %v237 = vunpack.c.l.b16 %v205
    %v238 = vunpack.c.l.b16 %v206
    %v239 = vunpack.c.l.b16 %v207
    %v240 = vpack.c.b16 %v225, %v224
    %v241 = vpack.c.b16 %v227, %v226
    %v242 = vpack.c.b16 %v229, %v228
    %v243 = vpack.c.b16 %v231, %v230
    %v244 = vpack.c.b16 %v233, %v232
    %v245 = vpack.c.b16 %v235, %v234
    %v246 = vpack.c.b16 %v237, %v236
    %v247 = vpack.c.b16 %v239, %v238
    %256 = vmatprep.subr.bf16.mxu0 0
    %257 = vmatpush1.bf16.msra.mxu0 %v247
    %258 = vmatprep.subr.bf16.mxu0 0
    %259 = vmatpush1.bf16.msra.mxu0 %v246
    %260 = vmatprep.subr.bf16.mxu0 0
    %261 = vmatpush1.bf16.msra.mxu0 %v245
    %262 = vmatprep.subr.bf16.mxu0 0
    %263 = vmatpush1.bf16.msra.mxu0 %v244
    %264 = vmatprep.subr.bf16.mxu0 0
    %265 = vmatpush1.bf16.msra.mxu0 %v243
    %266 = vmatprep.subr.bf16.mxu0 0
    %267 = vmatpush1.bf16.msra.mxu0 %v242
    %268 = vmatprep.subr.bf16.mxu0 0
    %269 = vmatpush1.bf16.msra.mxu0 %v241
    %270 = vmatprep.subr.bf16.mxu0 0
    %271 = vmatpush1.bf16.msra.mxu0 %v240
    %272 = vmatprep.subr.bf16.mxu0 0
    %273 = vmatpush2.bf16.msra.mxu0 0
    %274 = vmatprep.subr.bf16.mxu0 0
    %275 = vmatpush2.bf16.msra.mxu0 0
    %276 = vmatprep.subr.bf16.mxu0 0
    %277 = vmatpush2.bf16.msra.mxu0 0
    %278 = vmatprep.subr.bf16.mxu0 0
    %279 = vmatpush2.bf16.msra.mxu0 0
    %280 = vmatprep.subr.bf16.mxu0 0
    %281 = vmatpush2.bf16.msra.mxu0 0
    %282 = vmatprep.subr.bf16.mxu0 0
    %283 = vmatpush2.bf16.msra.mxu0 0
    %284 = vmatprep.subr.bf16.mxu0 0
    %285 = vmatpush2.bf16.msra.mxu0 0
    %286 = vmatprep.subr.bf16.mxu0 0
    %287 = vmatpush2.bf16.msra.mxu0 0
    %288 = vmatprep.mubr.bf16.mxu0 0
    %289 = vmatmul.mubr.bf16.gmra.mxu0 %v191
    %v290 = vpop.f32.mrf.mxu0
    %v291 = vadd.f32 0.0, %v290
    %v292 = vpop.f32.mrf.mxu0
    %v293 = vpop.f32.mrf.mxu0
    %v294 = vadd.f32 0.0, %v293
    %v295 = vpop.f32.mrf.mxu0
    %296 = vdwg.mxu0
    %v297 = vadd.f32 %v189, %v291
    %v298 = vadd.f32 %v190, %v294
    %299 = vst [vmem:[#allocation2] sm:$0xff] %v297
    %300 = vst [vmem:[#allocation2 + $0x8] sm:$0xff] %v298
    // Predicated region
    $region38: #{tpu_custom_call.1} parent=1 // pred_check
      %p301 = pneg %p63
    $region39: #{tpu_custom_call.1} parent=1 // pred_check_branch
      %303 = sbr.rel (%p301) target = $region41
    $region40: #{tpu_custom_call.1} parent=1 // pred_region
      %v304 = vld [vmem:[#allocation2] sm:$0xff]
      %v305 = vld [vmem:[#allocation2 + $0x8] sm:$0xff]
      %v306 = vld [vmem:[%s4] sm:$0x1]
      %v308 = vlaneseq
      %v309 = vshrl.u32 %v308, 7
      %v310 = vsub.s32 0, %v309
      %v311 = vrot.slane %v306, %v310
      %v313 = vadd.f32 %v304, %v311
      %v314 = vadd.f32 %v305, %v311
      %315 = vst [vmem:[#allocation9] sm:$0xff] %v313
      %316 = vst [vmem:[#allocation9 + $0x8] sm:$0xff] %v314
    $region41: #{tpu_custom_call.1} parent=1 // pred_fallthru
      _
    // Predicated region
    $region42: #{tpu_custom_call.1} parent=1 // pred_check
      _
    $region43: #{tpu_custom_call.1} parent=1 // pred_check_branch
      %318 = sbr.rel (0) target = $region45
    $region44: #{tpu_custom_call.1} parent=1 // pred_region
      %s320 = ssub.s32 256, 256
      %321 = vsyncadd [#allocation5], %s320
      %s322 = sshll.u32 [#allocation9], 4
      %s323 = int_to_ptr.vmem [resolvable:$true] %s322
      %328 = dma.vmem_to_hbm [thread:$0]  %s323, 256, %s5, [#allocation5], 128, 128, 8
    $region45: #{tpu_custom_call.1} parent=1 // pred_fallthru
      _
    // Predicated region
    $region46: #{tpu_custom_call.1} parent=1 // pred_check
      _
    $region47: #{tpu_custom_call.1} parent=1 // pred_check_branch
      %330 = sbr.rel (0) target = $region49
    $region48: #{tpu_custom_call.1} parent=1 // pred_region
      %331 = dma.done [#allocation5], 256
    $region49: #{tpu_custom_call.1} parent=1 // pred_fallthru
      _
    %332 = vsyncpa [#allocation4], 1
    %333 = vsyncpa [#allocation7], 1
    %334 = vsyncpa [#allocation5], 1

</llo_original>
